<compile_context>
chip_gen: v7x
topology: tpu7x:2x2x1
jax: 0.10.0
libtpu: 0.0.40
codegen_flags: <defaults>
</compile_context>

<pallas_src>
import numpy as np
import jax
import jax.numpy as jnp
from jax import lax
from jax.experimental import pallas as pl
from jax.experimental.pallas import tpu as pltpu


def _rise_kernel(n_ref, masks_ref, weff_ref, b_ref, sal_ref):
    """One N-tile of masks per grid step.

    n_ref     : (1,)      i32 SMEM -- true number of masks (scalar prefetch)
    masks_ref : (TN, HW)  bf16     -- 0/1 occlusion masks (exact in bf16)
    weff_ref  : (CL, HW)  bf16     -- channel-folded classifier weight (lane-dense)
    b_ref     : (1, CL)   f32      -- classifier bias (tiny; kept in VMEM)
    sal_ref   : (CL, HW)  f32      -- resident accumulator across the N grid axis
    """
    step = pl.program_id(0)

    @pl.when(step == 0)
    def _init():
        sal_ref[...] = jnp.zeros_like(sal_ref)

    masks = masks_ref[...]                                        # (TN, HW) bf16

    # --- black-box model: logits = masks @ w_eff^T + b  (single MXU matmul) ---
    logits = lax.dot_general(
        masks, weff_ref[...], (((1,), (1,)), ((), ())),
        preferred_element_type=jnp.float32) + b_ref[...]          # (TN, CL) f32

    # --- softmax over classes (f32 VPU math, reciprocal on the EUP slot) ---
    m = jnp.max(logits, axis=1, keepdims=True)
    e = jnp.exp(logits - m)
    p = e * pl.reciprocal(jnp.sum(e, axis=1, keepdims=True), approx=True)

    # fold the 1/N normalization into the tiny score matrix before the MXU
    inv_n = 1.0 / n_ref[0].astype(jnp.float32)
    p_scaled = (p * inv_n).astype(jnp.bfloat16)                   # (TN, CL)

    # --- saliency contribution: p^T @ masks, accumulated in f32 ---
    sal_ref[...] += lax.dot_general(
        p_scaled, masks, (((0,), (0,)), ((), ())),
        preferred_element_type=jnp.float32)                       # (CL, HW)


def blackbox_score(masks_flat, w_eff, b, n_true, *, tile_n=16):
    """masks_flat (Np, HW) bf16, w_eff (CL, HW) bf16, b (1, CL) f32 -> (CL, HW) f32."""
    Np, HW = masks_flat.shape
    CL = w_eff.shape[0]
    assert Np % tile_n == 0, "pad mask count to a multiple of tile_n (zero rows)"
    n_arr = jnp.asarray([n_true], jnp.int32)
    return pl.pallas_call(
        _rise_kernel,
        out_shape=jax.ShapeDtypeStruct((CL, HW), jnp.float32),
        grid_spec=pltpu.PrefetchScalarGridSpec(
            num_scalar_prefetch=1,
            grid=(Np // tile_n,),
            in_specs=[
                pl.BlockSpec((tile_n, HW), lambda i, n: (i, 0)),   # masks: tiled over N
                pl.BlockSpec((CL, HW), lambda i, n: (0, 0)),       # w_eff: resident
                pl.BlockSpec((1, CL), lambda i, n: (0, 0)),        # bias:  resident
            ],
            out_specs=pl.BlockSpec((CL, HW), lambda i, n: (0, 0)),  # resident accumulator
        ),
        compiler_params=pltpu.CompilerParams(
            dimension_semantics=("arbitrary",)),                    # reduction over N
    )(n_arr, masks_flat, w_eff, b)


def generate_b_masks(window_size, stride, image_size):
    """Mirror of BlackBoxScore.generate_b_masks (numpy, float32)."""
    rows = np.arange(0 + stride - window_size, image_size[0], stride)
    cols = np.arange(0 + stride - window_size, image_size[1], stride)
    masks = np.ones((len(rows) * len(cols), image_size[0], image_size[1]),
                    dtype=np.float32)
    i = 0
    for r in rows:
        for c in cols:
            r1, r2 = max(r, 0), min(r + window_size, image_size[0])
            c1, c2 = max(c, 0), min(c + window_size, image_size[1])
            masks[i, r1:r2, c1:c2] = 0.0
            i += 1
    return masks


if __name__ == "__main__":
    H = W = 16
    C = 4
    CL = 8
    window_size, stride = 8, 4
    TILE_N = 16   # bf16 sublane-tile multiple; at realistic RISE sizes pick per-chip
                  # (v7x: keep 2*TN*HW*2B well under the 32 MiB scoped VMEM; v5e/v6e larger)

    # sliding-window masks (N, H, W)
    masks_np = generate_b_masks(window_size, stride, (H, W))
    N = masks_np.shape[0]                              # 25 for these params
    Np = int(np.ceil(N / TILE_N) * TILE_N)             # pad N; padded rows are all-zero
    masks_flat_np = np.zeros((Np, H * W), np.float32)
    masks_flat_np[:N] = masks_np.reshape(N, H * W)
    masks_flat = jnp.asarray(masks_flat_np, jnp.bfloat16)   # 0/1 -> exact in bf16

    # deterministic inputs / synthetic black-box classifier params
    key = jax.random.PRNGKey(0)
    kx, kw, kb = jax.random.split(key, 3)
    x = jax.random.normal(kx, (1, C, H, W), jnp.float32)          # NCHW image
    w = jax.random.normal(kw, (C, H * W, CL), jnp.float32) * 0.05
    b = jax.random.normal(kb, (1, CL), jnp.float32) * 0.1

    # Fold the constant image into the classifier (one small XLA einsum);
    # the big (C,HW,CL) weight never enters the kernel.  (CL, HW) is lane-dense.
    x_flat = x[0].reshape(C, H * W)
    w_eff = jnp.einsum('cp,cpl->lp', x_flat, w).astype(jnp.bfloat16)   # (CL, HW)

    sal = blackbox_score(masks_flat, w_eff, b, N, tile_n=TILE_N).reshape(CL, H, W)
    jax.block_until_ready(sal)

    # numpy reference of the exact PyTorch forward semantics
    x_np = np.asarray(x)
    w_np = np.asarray(w).reshape(C * H * W, CL)
    b_np = np.asarray(b)
    stack = masks_np.reshape(N, 1, H, W) * x_np                   # (N,C,H,W)
    logits = stack.reshape(N, C * H * W) @ w_np + b_np            # (N,CL)
    e = np.exp(logits - logits.max(axis=1, keepdims=True))
    p_ref = e / e.sum(axis=1, keepdims=True)
    sal_ref = (p_ref.T @ masks_np.reshape(N, H * W)).reshape(CL, H, W) / N

    assert np.allclose(np.asarray(sal), sal_ref, atol=5e-3, rtol=5e-3), \
        "Pallas saliency mismatch vs reference"
    print("KERNEL_OK")
</pallas_src>

<mosaic_0001>
module attributes {stable_mosaic.version = 11 : i64} {
  func.func @_rise_kernel(%arg0: i32, %arg1: memref<1xi32, #tpu.memory_space<smem>>, %arg2: memref<16x256xbf16, #tpu.memory_space<vmem>>, %arg3: memref<8x256xbf16, #tpu.memory_space<vmem>>, %arg4: memref<1x8xf32, #tpu.memory_space<vmem>>, %arg5: memref<8x256xf32, #tpu.memory_space<vmem>>) attributes {dimension_semantics = [#tpu.dimension_semantics<arbitrary>], iteration_bounds = array<i64: 2>, scalar_prefetch = 1 : i64, scratch_operands = 0 : i64, tpu.core_type = #tpu.core_type<tc>, window_params = [{transform_indices = @transform_0, window_bounds = array<i64: 16, 256>}, {pipeline_mode = #tpu.pipeline_mode<synchronous>, transform_indices = @transform_1, window_bounds = array<i64: 8, 256>}, {pipeline_mode = #tpu.pipeline_mode<synchronous>, transform_indices = @transform_2, window_bounds = array<i64: 1, 8>}, {pipeline_mode = #tpu.pipeline_mode<synchronous>, transform_indices = @transform_3, window_bounds = array<i64: 8, 256>}]} {
    %c0_i32 = arith.constant 0 : i32
    %0 = arith.cmpi eq, %arg0, %c0_i32 : i32
    %1 = arith.extui %0 : i1 to i32
    %c0_i32_0 = arith.constant 0 : i32
    %2 = arith.cmpi ne, %1, %c0_i32_0 : i32
    scf.if %2 {
      %cst_15 = arith.constant 0.000000e+00 : f32
      %29 = vector.broadcast %cst_15 : f32 to vector<8x256xf32>
      %c0_16 = arith.constant 0 : index
      %c0_17 = arith.constant 0 : index
      %30 = vector.load %arg5[%c0_16, %c0_17] : memref<8x256xf32, #tpu.memory_space<vmem>>, vector<8x256xf32>
      tpu.vector_store %arg5[%c0_16, %c0_17], %29 {strides = array<i32>} : memref<8x256xf32, #tpu.memory_space<vmem>>, vector<8x256xf32>,
    } else {
    }
    %c0 = arith.constant 0 : index
    %c0_1 = arith.constant 0 : index
    %3 = vector.load %arg2[%c0, %c0_1] : memref<16x256xbf16, #tpu.memory_space<vmem>>, vector<16x256xbf16>
    %c0_2 = arith.constant 0 : index
    %c0_3 = arith.constant 0 : index
    %4 = vector.load %arg3[%c0_2, %c0_3] : memref<8x256xbf16, #tpu.memory_space<vmem>>, vector<8x256xbf16>
    %cst = arith.constant dense<0.000000e+00> : vector<16x8xf32>
    %5 = tpu.matmul %3, %4, %cst {dimension_numbers = #tpu.dot_dimension_numbers<[1], [1], [0], [0], [0, 0, 1, 0], [], []>} : vector<16x256xbf16>, vector<8x256xbf16>, vector<16x8xf32> -> vector<16x8xf32>
    %c0_4 = arith.constant 0 : index
    %c0_5 = arith.constant 0 : index
    %6 = vector.load %arg4[%c0_4, %c0_5] : memref<1x8xf32, #tpu.memory_space<vmem>>, vector<1x8xf32>
    %7 = vector.broadcast %6 : vector<1x8xf32> to vector<16x8xf32>
    %8 = arith.addf %5, %7 : vector<16x8xf32>
    %cst_6 = arith.constant dense<0xFF800000> : vector<16xf32>
    %9 = vector.multi_reduction <maximumf>, %8, %cst_6 [1] : vector<16x8xf32> to vector<16xf32>
    %10 = vector.shape_cast %9 : vector<16xf32> to vector<16x1xf32>
    %11 = vector.broadcast %10 : vector<16x1xf32> to vector<16x8xf32>
    %12 = arith.subf %8, %11 : vector<16x8xf32>
    %13 = math.exp %12 : vector<16x8xf32>
    %cst_7 = arith.constant dense<0.000000e+00> : vector<16xf32>
    %14 = vector.multi_reduction <add>, %13, %cst_7 [1] : vector<16x8xf32> to vector<16xf32>
    %15 = vector.shape_cast %14 : vector<16xf32> to vector<16x1xf32>
    %16 = tpu.reciprocal %15 {approx = true} : vector<16x1xf32> -> vector<16x1xf32>
    %17 = vector.broadcast %16 : vector<16x1xf32> to vector<16x8xf32>
    %18 = arith.mulf %13, %17 : vector<16x8xf32>
    %c0_8 = arith.constant 0 : index
    %19 = memref.load %arg1[%c0_8] : memref<1xi32, #tpu.memory_space<smem>>
    %20 = arith.sitofp %19 : i32 to f32
    %cst_9 = arith.constant 1.000000e+00 : f32
    %21 = arith.divf %cst_9, %20 : f32
    %22 = vector.broadcast %21 : f32 to vector<16x8xf32>
    %23 = arith.mulf %18, %22 : vector<16x8xf32>
    %24 = arith.truncf %23 : vector<16x8xf32> to vector<16x8xbf16>
    %c0_10 = arith.constant 0 : index
    %c0_11 = arith.constant 0 : index
    %25 = vector.load %arg5[%c0_10, %c0_11] : memref<8x256xf32, #tpu.memory_space<vmem>>, vector<8x256xf32>
    %cst_12 = arith.constant dense<0.000000e+00> : vector<8x256xf32>
    %26 = tpu.matmul %24, %3, %cst_12 {dimension_numbers = #tpu.dot_dimension_numbers<[0], [0], [1], [1], [0, 1, 1, 1], [], []>} : vector<16x8xbf16>, vector<16x256xbf16>, vector<8x256xf32> -> vector<8x256xf32>
    %27 = arith.addf %25, %26 : vector<8x256xf32>
    %c0_13 = arith.constant 0 : index
    %c0_14 = arith.constant 0 : index
    %28 = vector.load %arg5[%c0_13, %c0_14] : memref<8x256xf32, #tpu.memory_space<vmem>>, vector<8x256xf32>
    tpu.vector_store %arg5[%c0_13, %c0_14], %27 {strides = array<i32>} : memref<8x256xf32, #tpu.memory_space<vmem>>, vector<8x256xf32>,
    return
  }
  func.func @transform_0(%arg0: i32, %arg1: memref<1xi32, #tpu.memory_space<smem>>) -> (i32, i32) {
    %c0_i32 = arith.constant 0 : i32
    %c0_i32_0 = arith.constant 0 : i32
    return %arg0, %c0_i32 : i32, i32
  }
  func.func @transform_1(%arg0: i32, %arg1: memref<1xi32, #tpu.memory_space<smem>>) -> (i32, i32) {
    %c0_i32 = arith.constant 0 : i32
    %c0_i32_0 = arith.constant 0 : i32
    %c0_i32_1 = arith.constant 0 : i32
    return %c0_i32, %c0_i32_0 : i32, i32
  }
  func.func @transform_2(%arg0: i32, %arg1: memref<1xi32, #tpu.memory_space<smem>>) -> (i32, i32) {
    %c0_i32 = arith.constant 0 : i32
    %c0_i32_0 = arith.constant 0 : i32
    %c0_i32_1 = arith.constant 0 : i32
    return %c0_i32, %c0_i32_0 : i32, i32
  }
  func.func @transform_3(%arg0: i32, %arg1: memref<1xi32, #tpu.memory_space<smem>>) -> (i32, i32) {
    %c0_i32 = arith.constant 0 : i32
    %c0_i32_0 = arith.constant 0 : i32
    %c0_i32_1 = arith.constant 0 : i32
    return %c0_i32, %c0_i32_0 : i32, i32
  }
}

</mosaic_0001>

<llo_original>
// kernel: tpu_custom_call.1
$region0: #{tpu_custom_call.1}
  #allocation0 [shape = 'u32[]', space=smem, size = 0x4, offset = 0x4, fixed_abs, tag = 'smem constant byte address 0x4 - core index']
  #allocation1 [shape = 'u32[144,128]{1,0:T(1,128)}', space=vmem, size = 0x12000, scoped, tag = 'internal scratch']
  #allocation2 [shape = 's32[1]{0}', space=sflag, size = 0x4, scoped, tag = 'scoped memory for tpu_custom_call.1']
  #allocation3 [shape = 's32[1]{0:T(128)S(6)}', space=smem, size = 0x200, scoped, tag = 'prefetched SMEM operand 0']
  %s0 = inlined_call_operand.<no memory space> [shape: s32[1], index: 0, kind: input, shape index: {}]
  %s1 = inlined_call_operand.hbm [shape: bf16[32,256], index: 1, kind: input, shape index: {}]
  %s2 = inlined_call_operand.hbm [shape: bf16[8,256], index: 2, kind: input, shape index: {}]
  %s3 = inlined_call_operand.vmem [shape: f32[1,8], index: 3, kind: input, shape index: {}]
  %s4 = inlined_call_operand.hbm [shape: f32[8,256], index: 4, kind: output, shape index: {}]
  %s5 = sld [smem:[#allocation0]]
  $region57: #{tpu_custom_call.1} parent=0
    _
  %s7 = ssub.s32 1, %s5
  %s8 = scalar_select 0, %s7, %s5
  %9 = sst [smem:[#allocation3]] %s0
  $region1: #{tpu_custom_call.1} parent=0
    #allocation4 [shape = 'u8[16384]{0}', space=vmem, size = 0x4000, scoped, tag = 'input window, operand 1']
    #allocation5 [shape = 's32[2]{0}', space=sflag, size = 0x8, scoped, tag = 'scoped memory for tpu_custom_call.1']
    #allocation6 [shape = 's32[2]{0}', space=sflag, size = 0x8, scoped, tag = 'scoped memory for tpu_custom_call.1']
    #allocation7 [shape = 'u8[4096]{0}', space=vmem, size = 0x1000, scoped, tag = 'input window, operand 2, single buffered']
    #allocation8 [shape = 's32[1]{0}', space=sflag, size = 0x4, scoped, tag = 'scoped memory for tpu_custom_call.1']
    #allocation9 [shape = 'u8[8192]{0}', space=vmem, size = 0x2000, scoped, tag = 'output window, operand 0, single buffered']
    %10 = vsyncpa [#allocation5], 0
    %s11 = scalar_lea.sflag [#allocation5], 1
    %12 = vsyncpa %s11, 0
    %13 = vsyncpa [#allocation8], 0
    %14 = vsyncpa [#allocation6], 0
    loop: start=0, step=1, limit=4
    $region2: #{tpu_custom_call.1} parent=1 // loop_pre_header
      _
    $region3: #{tpu_custom_call.1} parent=1 // loop_header
      %s16 = sphi 0, %s20
      %p17 = scmp.ge.s32.totalorder %s16, 4
      %s26 = sphi 0, %s28
      %s29 = sphi 0, %s26
      %s30 = sphi 0, %s29
      %s46 = sphi 0, %s30
      %s50 = sphi 0, %s50
      %s52 = sphi 0, %s50
      %s53 = sphi 0, %s52
      %s67 = sphi 0, %s53
      %s71 = sphi 0, %s71
      %s73 = sphi 0, %s71
      %s74 = sphi 0, %s73
      %s88 = sphi 0, %s74
      %s92 = sphi 0, %s92
      %s94 = sphi 0, %s92
      %s95 = sphi 0, %s94
      %s109 = sphi 0, %s95
    $region4: #{tpu_custom_call.1} parent=1 // loop_header_branch
      %19 = sbr.rel (%p17) target = $region8
    $region5: #{tpu_custom_call.1} parent=1 // loop_body
      %s21 = ssub.s32 %s16, 1
      %s22 = ssub.s32 %s16, 2
      %s23 = sadd.s32 %s16, 1
      %s24 = ssub.s32 %s16, %s23
      %p25 = scmp.eq.s32.totalorder %s24, 0
      %s27 = sadd.s32 %s26, 1
      %s28 = scalar_select %p25, %s26, %s27
      %p31 = pneg %p25
      %p32 = scmp.eq.s32.totalorder %s16, 1
      %p33 = por %p31, %p32
      %p34 = scmp.ne.s32.totalorder %s26, %s29
      %p35 = scmp.eq.s32.totalorder %s16, 0
      %p36 = por %p34, %p35
      %p37 = scmp.ne.s32.totalorder %s26, %s29
      %p38 = scmp.eq.s32.totalorder %s21, 1
      %p39 = por %p37, %p38
      %p40 = scmp.ne.s32.totalorder %s29, %s30
      %p41 = scmp.eq.s32.totalorder %s21, 0
      %p42 = por %p40, %p41
      %p43 = scmp.ne.s32.totalorder %s29, %s30
      %p44 = scmp.eq.s32.totalorder %s22, 1
      %p45 = por %p43, %p44
      %p47 = scmp.ne.s32.totalorder %s30, %s46
      %p48 = scmp.eq.s32.totalorder %s22, 0
      %p49 = por %p47, %p48
      %s51 = sadd.s32 %s50, 1
      %p54 = scmp.eq.s32.totalorder %s16, 1
      %p55 = scmp.ne.s32.totalorder %s50, %s52
      %p56 = scmp.eq.s32.totalorder %s16, 0
      %p57 = por %p55, %p56
      %p58 = scmp.ne.s32.totalorder %s50, %s52
      %p59 = scmp.eq.s32.totalorder %s21, 1
      %p60 = por %p58, %p59
      %p61 = scmp.ne.s32.totalorder %s52, %s53
      %p62 = scmp.eq.s32.totalorder %s21, 0
      %p63 = por %p61, %p62
      %p64 = scmp.ne.s32.totalorder %s52, %s53
      %p65 = scmp.eq.s32.totalorder %s22, 1
      %p66 = por %p64, %p65
      %p68 = scmp.ne.s32.totalorder %s53, %s67
      %p69 = scmp.eq.s32.totalorder %s22, 0
      %p70 = por %p68, %p69
      %s72 = sadd.s32 %s71, 1
      %p75 = scmp.eq.s32.totalorder %s16, 1
      %p76 = scmp.ne.s32.totalorder %s71, %s73
      %p77 = scmp.eq.s32.totalorder %s16, 0
      %p78 = por %p76, %p77
      %p79 = scmp.ne.s32.totalorder %s71, %s73
      %p80 = scmp.eq.s32.totalorder %s21, 1
      %p81 = por %p79, %p80
      %p82 = scmp.ne.s32.totalorder %s73, %s74
      %p83 = scmp.eq.s32.totalorder %s21, 0
      %p84 = por %p82, %p83
      %p85 = scmp.ne.s32.totalorder %s73, %s74
      %p86 = scmp.eq.s32.totalorder %s22, 1
      %p87 = por %p85, %p86
      %p89 = scmp.ne.s32.totalorder %s74, %s88
      %p90 = scmp.eq.s32.totalorder %s22, 0
      %p91 = por %p89, %p90
      %s93 = sadd.s32 %s92, 1
      %p96 = scmp.eq.s32.totalorder %s16, 1
      %p97 = scmp.ne.s32.totalorder %s92, %s94
      %p98 = scmp.eq.s32.totalorder %s16, 0
      %p99 = por %p97, %p98
      %p100 = scmp.ne.s32.totalorder %s92, %s94
      %p101 = scmp.eq.s32.totalorder %s21, 1
      %p102 = por %p100, %p101
      %p103 = scmp.ne.s32.totalorder %s94, %s95
      %p104 = scmp.eq.s32.totalorder %s21, 0
      %p105 = por %p103, %p104
      %p106 = scmp.ne.s32.totalorder %s94, %s95
      %p107 = scmp.eq.s32.totalorder %s22, 1
      %p108 = por %p106, %p107
      %p110 = scmp.ne.s32.totalorder %s95, %s109
      %p111 = scmp.eq.s32.totalorder %s22, 0
      %p112 = por %p110, %p111
      %p113 = scmp.le.s32.totalorder 1, %s16
      %p114 = scmp.lt.s32.totalorder %s16, 3
      %p115 = pnand %p113, %p114
      %p116 = pneg %p115
      // Predicated region
      $region9: #{tpu_custom_call.1} parent=5 // pred_check
        _
      $region10: #{tpu_custom_call.1} parent=5 // pred_check_branch
        %118 = sbr.rel (%p115) target = $region12
      $region11: #{tpu_custom_call.1} parent=5 // pred_region
        %s119 = ssub.s32 %s16, 1
        // Predicated region
        $region13: #{tpu_custom_call.1} parent=11 // pred_check
          %p120 = pneg %p63
        $region14: #{tpu_custom_call.1} parent=11 // pred_check_branch
          %122 = sbr.rel (%p120) target = $region16
        $region15: #{tpu_custom_call.1} parent=11 // pred_region
          %s124 = ssub.s32 128, 128
          %125 = vsyncadd [#allocation8], %s124
          %s127 = sshll.u32 [#allocation7], 4
          %s128 = int_to_ptr.vmem [resolvable:$true] %s127
          %130 = dma.hbm_to_vmem [thread:$0]  %s2, 128, %s128, [#allocation8]
        $region16: #{tpu_custom_call.1} parent=11 // pred_fallthru
          _
        // Predicated region
        $region17: #{tpu_custom_call.1} parent=11 // pred_check
          %p131 = pneg %p84
        $region18: #{tpu_custom_call.1} parent=11 // pred_check_branch
          %133 = sbr.rel (%p131) target = $region20
        $region19: #{tpu_custom_call.1} parent=11 // pred_region
          _
        $region20: #{tpu_custom_call.1} parent=11 // pred_fallthru
          _
      $region12: #{tpu_custom_call.1} parent=5 // pred_fallthru
        _
      %p134 = scmp.lt.s32.totalorder %s16, 2
      // Predicated region
      $region21: #{tpu_custom_call.1} parent=5 // pred_check
        %p135 = pneg %p134
      $region22: #{tpu_custom_call.1} parent=5 // pred_check_branch
        %137 = sbr.rel (%p135) target = $region24
      $region23: #{tpu_custom_call.1} parent=5 // pred_region
        // Predicated region
        $region25: #{tpu_custom_call.1} parent=23 // pred_check
          %p138 = pneg %p36
        $region26: #{tpu_custom_call.1} parent=23 // pred_check_branch
          %140 = sbr.rel (%p138) target = $region28
        $region27: #{tpu_custom_call.1} parent=23 // pred_region
          %s141 = sand.u32 %s26, 1
          %s142 = scalar_lea.sflag [#allocation5], %s141
          %s143 = sand.u32 %s26, 1
          %s144 = smul.addr %s143, 16
          %s145 = scalar_lea.vmem [#allocation4], %s144
          %s146 = smul.u32 2, %s16
          %s148 = ssub.s32 256, 256
          %149 = vsyncadd %s142, %s148
          %s150 = smul.addr %s146, 2
          %s151 = smul.addr %s150, 64
          %s152 = scalar_lea.hbm %s1, %s151
          %s153 = sshll.u32 %s145, 4
          %s154 = int_to_ptr.vmem [resolvable:$true] %s153
          %159 = dma.hbm_to_vmem [thread:$0]  %s152, 256, %s154, %s142, 128, 128, 8
        $region28: #{tpu_custom_call.1} parent=23 // pred_fallthru
          _
      $region24: #{tpu_custom_call.1} parent=5 // pred_fallthru
        _
      %p160 = scmp.le.s32.totalorder 1, %s16
      %p161 = scmp.lt.s32.totalorder %s16, 3
      %p162 = pnand %p160, %p161
      %p163 = pneg %p162
      // Predicated region
      $region29: #{tpu_custom_call.1} parent=5 // pred_check
        _
      $region30: #{tpu_custom_call.1} parent=5 // pred_check_branch
        %165 = sbr.rel (%p162) target = $region32
      $region31: #{tpu_custom_call.1} parent=5 // pred_region
        %s166 = ssub.s32 %s16, 1
        %s167 = sand.u32 %s29, 1
        %s168 = scalar_lea.sflag [#allocation5], %s167
        %s169 = sand.u32 %s29, 1
        %s170 = smul.addr %s169, 16
        %s171 = scalar_lea.vmem [#allocation4], %s170
        // Predicated region
        $region33: #{tpu_custom_call.1} parent=31 // pred_check
          %p172 = pneg %p42
        $region34: #{tpu_custom_call.1} parent=31 // pred_check_branch
          %174 = sbr.rel (%p172) target = $region36
        $region35: #{tpu_custom_call.1} parent=31 // pred_region
          %175 = dma.done %s168, 256
        $region36: #{tpu_custom_call.1} parent=31 // pred_fallthru
          _
        // Predicated region
        $region37: #{tpu_custom_call.1} parent=31 // pred_check
          %p176 = pneg %p63
        $region38: #{tpu_custom_call.1} parent=31 // pred_check_branch
          %178 = sbr.rel (%p176) target = $region40
        $region39: #{tpu_custom_call.1} parent=31 // pred_region
          %179 = dma.done [#allocation8], 128
        $region40: #{tpu_custom_call.1} parent=31 // pred_fallthru
          _
        %s180 = sand.u32 %s29, 1
        %s181 = scalar_lea.sflag [#allocation5], %s180
        %s182 = sand.u32 %s29, 1
        %s183 = smul.addr %s182, 16
        %s184 = scalar_lea.vmem [#allocation4], %s183
        %p185 = pneg %p42
        %p186 = pneg %p39
        %p187 = pneg %p63
        %p188 = pneg %p60
        %p189 = pneg %p84
        %p190 = pneg %p81
        %p191 = pneg %p105
        %p192 = pneg %p102
        %s193 = smul.u32 2, %s21
        %p195 = scmp.eq.s32.totalorder %s21, 0
        // Predicated region
        $region41: #{tpu_custom_call.1} parent=31 // pred_check
          %p196 = pneg %p195
        $region42: #{tpu_custom_call.1} parent=31 // pred_check_branch
          %198 = sbr.rel (%p196) target = $region44
        $region43: #{tpu_custom_call.1} parent=31 // pred_region
          %199 = vst [vmem:[#allocation9] sm:$0xff] 0.0
          %200 = vst [vmem:[#allocation9 + $0x8] sm:$0xff] 0.0
        $region44: #{tpu_custom_call.1} parent=31 // pred_fallthru
          _
        %v201 = vld [vmem:[%s171] sm:$0xff]
        %v202 = vld [vmem:[%s171 + $0x8] sm:$0xff]
        %v203 = vld [vmem:[#allocation7] sm:$0xff]
        %v204 = vld [vmem:[%s3] sm:$0x1]
        %v206 = vlaneseq
        %v207 = vshrl.u32 %v206, 7
        %v208 = vsub.s32 0, %v207
        %v209 = vrot.slane %v204, %v208
        %v213 = vunpack.c.l.b16 %v201
        %v214 = vunpack.c.h.b16 %v201
        %v215 = vunpack.c.l.b16 %v202
        %v216 = vunpack.c.h.b16 %v202
        %v217 = vpack.c.b16 %v215, %v213
        %v218 = vpack.c.b16 %v216, %v214
        %v222 = vunpack.c.l.b16 %v203
        %v223 = vunpack.c.h.b16 %v203
        %v224 = vpack.c.b16 %v222, %v222
        %v225 = vpack.c.b16 %v223, %v223
        %228 = vmatprep.subr.bf16.mxu0 %v225
        %229 = vmatpush1.bf16.xpose.msra.mxu0 %v224
        %230 = vmatprep.subr.bf16.mxu0 0
        %231 = vmatpush1.bf16.xpose.msra.mxu0 0
        %232 = vmatprep.subr.bf16.mxu0 0
        %233 = vmatpush1.bf16.xpose.msra.mxu0 0
        %234 = vmatprep.subr.bf16.mxu0 0
        %235 = vmatpush1.bf16.xpose.msra.mxu0 0
        %236 = vmatprep.subr.bf16.mxu0 0
        %237 = vmatpush1.bf16.xpose.msra.mxu0 0
        %238 = vmatprep.subr.bf16.mxu0 0
        %239 = vmatpush1.bf16.xpose.msra.mxu0 0
        %240 = vmatprep.subr.bf16.mxu0 0
        %241 = vmatpush1.bf16.xpose.msra.mxu0 0
        %242 = vmatprep.subr.bf16.mxu0 0
        %243 = vmatpush1.bf16.xpose.msra.mxu0 0
        %244 = vmatprep.subr.bf16.mxu0 0
        %245 = vmatpush1.bf16.xpose.msra.mxu0 0
        %246 = vmatprep.subr.bf16.mxu0 0
        %247 = vmatpush1.bf16.xpose.msra.mxu0 0
        %248 = vmatprep.subr.bf16.mxu0 0
        %249 = vmatpush1.bf16.xpose.msra.mxu0 0
        %250 = vmatprep.subr.bf16.mxu0 0
        %251 = vmatpush1.bf16.xpose.msra.mxu0 0
        %252 = vmatprep.subr.bf16.mxu0 0
        %253 = vmatpush1.bf16.xpose.msra.mxu0 0
        %254 = vmatprep.subr.bf16.mxu0 0
        %255 = vmatpush1.bf16.xpose.msra.mxu0 0
        %256 = vmatprep.subr.bf16.mxu0 0
        %257 = vmatpush1.bf16.xpose.msra.mxu0 0
        %258 = vmatprep.subr.bf16.mxu0 0
        %259 = vmatpush1.bf16.xpose.msra.mxu0 0
        %260 = vmatprep.mubr.bf16.mxu0 %v218
        %261 = vmatmul.mubr.bf16.gmra.mrb[0].mxu0 %v217
        %v262 = vpop.f32.mrb[0].mxu0
        %v263 = vadd.f32 %v209, %v262
        %v264 = vpop.f32.mrb[0].mxu0
        %v265 = vpop.f32.mrb[0].mxu0
        %v266 = vadd.f32 %v209, %v265
        %v267 = vpop.f32.mrb[0].mxu0
        %268 = vdwg.mxu0
        %vm269 = vcmask 64512
        %v270 = vsel %vm269, %v263, -inf
        %271 = vmax.xlane.f32.xlu0 %v270
        %v272 = vpop.xlane.xlu0 %271
        %v273 = vsel %vm269, %v266, -inf
        %274 = vmax.xlane.f32.xlu0 %v273
        %v275 = vpop.xlane.xlu0 %274
        %v276 = vsub.f32 %v263, %v272
        %v277 = vsub.f32 %v266, %v275
        %v278 = vmul.f32 %v276, 1.442695
        %v279 = vpow.pop %v278
        %v280 = vmul.f32 %v277, 1.442695
        %v281 = vpow.pop %v280
        %v282 = vsel %vm269, %v279, 0.0
        %283 = vadd.xlane.f32.xlu0 %v282
        %v284 = vpop.xlane.xlu0 %283
        %v285 = vsel %vm269, %v281, 0.0
        %286 = vadd.xlane.f32.xlu0 %v285
        %v287 = vpop.xlane.xlu0 %286
        %v288 = vrcp.pop %v284
        %v289 = vrcp.pop %v287
        %v290 = vmul.f32 %v279, %v288
        %v291 = vmul.f32 %v281, %v289
        %s292 = sld [smem:[#allocation3]]
        %s293 = scvt.s32.f32 %s292
        %v294 = vstv %s293
        %v295 = vrcp.pop %v294
        %s296 = vtos %v295
        %v297 = vstv %s296
        %v298 = vmul.f32 %v290, %v297
        %v299 = vmul.f32 %v291, %v297
        %v300 = vpack.c.bf16 %v299, %v298
        %v301 = vld [vmem:[#allocation9] sm:$0xff]
        %v302 = vld [vmem:[#allocation9 + $0x8] sm:$0xff]
        %303 = vxpose.xlu0.c.b16.start [1/8] %v300, 128
        %304 = vxpose.xlu0.c.b16.cont [2/8] 0, 128
        %305 = vxpose.xlu0.c.b16.cont [3/8] 0, 128
        %306 = vxpose.xlu0.c.b16.cont [4/8] 0, 128
        %307 = vxpose.xlu0.c.b16.cont [5/8] 0, 128
        %308 = vxpose.xlu0.c.b16.cont [6/8] 0, 128
        %309 = vxpose.xlu0.c.b16.cont [7/8] 0, 128
        %310 = vxpose.xlu0.c.b16.end [8/8] 0, 128
        %v311 = vpop.trf.xlu0
        %v312 = vpop.trf.xlu0
        %v313 = vpop.trf.xlu0
        %v314 = vpop.trf.xlu0
        %v315 = vpop.trf.xlu0
        %v316 = vpop.trf.xlu0
        %v317 = vpop.trf.xlu0
        %v318 = vpop.trf.xlu0
        %vm319 = vcmask 130048
        %v321 = vsel %vm319, %v311, 0
        %323 = vmatprep.subr.bf16.mxu0 %v218
        %324 = vmatpush1.bf16.msra.mxu0 %v217
        %325 = vmatprep.subr.bf16.mxu0 0
        %326 = vmatpush1.bf16.msra.mxu0 0
        %327 = vmatprep.subr.bf16.mxu0 0
        %328 = vmatpush1.bf16.msra.mxu0 0
        %329 = vmatprep.subr.bf16.mxu0 0
        %330 = vmatpush1.bf16.msra.mxu0 0
        %331 = vmatprep.subr.bf16.mxu0 0
        %332 = vmatpush1.bf16.msra.mxu0 0
        %333 = vmatprep.subr.bf16.mxu0 0
        %334 = vmatpush1.bf16.msra.mxu0 0
        %335 = vmatprep.subr.bf16.mxu0 0
        %336 = vmatpush1.bf16.msra.mxu0 0
        %337 = vmatprep.subr.bf16.mxu0 0
        %338 = vmatpush1.bf16.msra.mxu0 0
        %339 = vmatprep.subr.bf16.mxu0 0
        %340 = vmatpush1.bf16.msra.mxu0 0
        %341 = vmatprep.subr.bf16.mxu0 0
        %342 = vmatpush1.bf16.msra.mxu0 0
        %343 = vmatprep.subr.bf16.mxu0 0
        %344 = vmatpush1.bf16.msra.mxu0 0
        %345 = vmatprep.subr.bf16.mxu0 0
        %346 = vmatpush1.bf16.msra.mxu0 0
        %347 = vmatprep.subr.bf16.mxu0 0
        %348 = vmatpush1.bf16.msra.mxu0 0
        %349 = vmatprep.subr.bf16.mxu0 0
        %350 = vmatpush1.bf16.msra.mxu0 0
        %351 = vmatprep.subr.bf16.mxu0 0
        %352 = vmatpush1.bf16.msra.mxu0 0
        %353 = vmatprep.subr.bf16.mxu0 0
        %354 = vmatpush1.bf16.msra.mxu0 0
        %355 = vmatprep.mubr.bf16.mxu0 0
        %356 = vmatmul.mubr.bf16.gmra.mrb[0].mxu0 %v321
        %v357 = vpop.f32.mrb[0].mxu0
        %v358 = vadd.f32 0.0, %v357
        %v359 = vpop.f32.mrb[0].mxu0
        %v360 = vadd.f32 0.0, %v359
        %v361 = vpop.f32.mrb[0].mxu0
        %v362 = vpop.f32.mrb[0].mxu0
        %363 = vdwg.mxu0
        %v364 = vadd.f32 %v301, %v358
        %v365 = vadd.f32 %v302, %v360
        %366 = vst [vmem:[#allocation9] sm:$0xff] %v364
        %367 = vst [vmem:[#allocation9 + $0x8] sm:$0xff] %v365
        // Predicated region
        $region45: #{tpu_custom_call.1} parent=31 // pred_check
          %p368 = pneg %p102
        $region46: #{tpu_custom_call.1} parent=31 // pred_check_branch
          %370 = sbr.rel (%p368) target = $region48
        $region47: #{tpu_custom_call.1} parent=31 // pred_region
          %s372 = ssub.s32 256, 256
          %373 = vsyncadd [#allocation6], %s372
          %s375 = sshll.u32 [#allocation9], 4
          %s376 = int_to_ptr.vmem [resolvable:$true] %s375
          %378 = dma.vmem_to_hbm [thread:$0]  %s376, 256, %s4, [#allocation6]
        $region48: #{tpu_custom_call.1} parent=31 // pred_fallthru
          _
        // Predicated region
        $region49: #{tpu_custom_call.1} parent=31 // pred_check
          %p379 = pneg %p102
        $region50: #{tpu_custom_call.1} parent=31 // pred_check_branch
          %381 = sbr.rel (%p379) target = $region52
        $region51: #{tpu_custom_call.1} parent=31 // pred_region
          %382 = dma.done [#allocation6], 256
        $region52: #{tpu_custom_call.1} parent=31 // pred_fallthru
          _
      $region32: #{tpu_custom_call.1} parent=5 // pred_fallthru
        _
      %p383 = scmp.le.s32.totalorder 2, %s16
      // Predicated region
      $region53: #{tpu_custom_call.1} parent=5 // pred_check
        %p384 = pneg %p383
      $region54: #{tpu_custom_call.1} parent=5 // pred_check_branch
        %386 = sbr.rel (%p384) target = $region56
      $region55: #{tpu_custom_call.1} parent=5 // pred_region
        %s387 = ssub.s32 %s16, 2
      $region56: #{tpu_custom_call.1} parent=5 // pred_fallthru
        _
    $region6: #{tpu_custom_call.1} parent=1 // loop_footer
      %s20 = sadd.s32 1, %s16
    $region7: #{tpu_custom_call.1} parent=1 // loop_footer_branch
      %15 = sbr.rel target = $region3
    $region8: #{tpu_custom_call.1} parent=1 // loop_exit
      _
    %388 = vsyncpa [#allocation5], 1
    %s389 = scalar_lea.sflag [#allocation5], 1
    %390 = vsyncpa %s389, 1
    %391 = vsyncpa [#allocation8], 1
    %392 = vsyncpa [#allocation6], 1
    %s393 = scalar_lea.sflag [#allocation6], 1
    %394 = vsyncpa %s393, 1

</llo_original>
